<compile_context>
chip_gen: v7x
topology: tpu7x:2x2x1
jax: 0.10.0
libtpu: 0.0.40
codegen_flags: <defaults>
</compile_context>

<pallas_src>
import functools

import jax
import jax.numpy as jnp
from jax import lax
from jax.experimental import pallas as pl
from jax.experimental.pallas import tpu as pltpu


# ----------------------------------------------------------------------------
# per-generation configuration
# ----------------------------------------------------------------------------
@functools.lru_cache(maxsize=None)
def _tpu_config():
    try:
        kind = jax.devices()[0].device_kind.lower()
    except Exception:  # pragma: no cover - defensive
        kind = ""
    is_v7 = "v7" in kind
    is_pre_v6 = any(t in kind for t in ("v2", "v3", "v4", "v5"))
    return dict(
        # v6e / v7x have a bf16 EUP -> bf16 softmax exponent; v5e and older
        # keep the exponent in f32 (no bf16 EUP there).
        bf16_eup=not is_pre_v6,
        # v7x has only 64 MiB VMEM per TensorCore -> cap scoped VMEM at 48 MiB
        # and keep kv tiles moderate; v5e/v6e have 128 MiB -> 64 MiB + bigger
        # kv tiles.
        vmem_limit=(48 if is_v7 else 64) * 1024 * 1024,
        tq_target=256,
        tk_target=256 if is_v7 else 512,
        lin_tm=256,
        lin_tn=512,
        lin_tk=512,
    )


# ----------------------------------------------------------------------------
# tile-size helpers
# ----------------------------------------------------------------------------
def _pick_tile(dim, target, aligns=(256, 128, 8)):
    """Largest multiple of one of `aligns` that divides `dim` and is <= target.

    Falls back to the full dim (always legal: a block equal to the full array
    dim satisfies the (8,128) constraint)."""
    if dim <= target:
        return dim
    for align in aligns:
        t = (target // align) * align
        while t >= align:
            if dim % t == 0:
                return t
            t -= align
    return dim


def _pick_div(dim, target, aligns=(128, 8)):
    """Largest divisor of `dim` <= target, preferring multiples of `aligns`."""
    # TODO(synk): for awkward sequence lengths (e.g. ViT N=197) this falls back
    # to tiny divisors / the full dim; padding N to a multiple of 128 with
    # masking would keep kv blocking effective.
    if dim <= target:
        return dim
    for align in aligns:
        t = (target // align) * align
        while t >= align:
            if dim % t == 0:
                return t
            t -= align
    t = target
    while t > 1:
        if dim % t == 0:
            return t
        t -= 1
    return dim


# ----------------------------------------------------------------------------
# Tiled linear (y = x @ w + b)  -- pipelined matmul with f32 accumulator
# ----------------------------------------------------------------------------
def _linear_kernel(x_ref, w_ref, b_ref, o_ref, acc_ref):
    @pl.when(pl.program_id(2) == 0)
    def _():
        acc_ref[...] = jnp.zeros(acc_ref.shape, acc_ref.dtype)

    acc_ref[...] += jnp.dot(x_ref[...], w_ref[...],
                            preferred_element_type=jnp.float32)

    @pl.when(pl.program_id(2) == pl.num_programs(2) - 1)
    def _():
        o_ref[...] = (acc_ref[...]
                      + b_ref[...].astype(jnp.float32)).astype(o_ref.dtype)


def linear_pallas(x, w, b, *, out_dtype=None,
                  tm_target=None, tn_target=None, tk_target=None):
    """y = x @ w + b, with w stored as (K, Nout) (i.e. PyTorch weight.T).

    x / w are expected in the MXU compute dtype (bf16); b stays f32 and is
    added onto the f32 accumulator; the output is cast to `out_dtype`."""
    cfg = _tpu_config()
    if out_dtype is None:
        out_dtype = x.dtype
    if tm_target is None:
        tm_target = cfg["lin_tm"]
    if tn_target is None:
        tn_target = cfg["lin_tn"]
    if tk_target is None:
        tk_target = cfg["lin_tk"]

    M, K = x.shape
    _, Nout = w.shape
    tm = _pick_tile(M, tm_target)
    tn = _pick_tile(Nout, tn_target)
    tk = _pick_tile(K, tk_target)
    dsize = jnp.dtype(x.dtype).itemsize
    cost = pl.CostEstimate(
        flops=2 * M * K * Nout,
        transcendentals=0,
        bytes_accessed=(M * K + K * Nout) * dsize
        + M * Nout * jnp.dtype(out_dtype).itemsize + Nout * 4)
    return pl.pallas_call(
        _linear_kernel,
        out_shape=jax.ShapeDtypeStruct((M, Nout), out_dtype),
        grid=(M // tm, Nout // tn, K // tk),
        in_specs=[
            pl.BlockSpec((tm, tk), lambda i, j, k: (i, k)),
            pl.BlockSpec((tk, tn), lambda i, j, k: (k, j)),
            pl.BlockSpec((1, tn), lambda i, j, k: (0, j)),
        ],
        out_specs=pl.BlockSpec((tm, tn), lambda i, j, k: (i, j)),
        scratch_shapes=[pltpu.VMEM((tm, tn), jnp.float32)],
        compiler_params=pltpu.CompilerParams(
            dimension_semantics=("parallel", "parallel", "arbitrary"),
            vmem_limit_bytes=cfg["vmem_limit"]),
        cost_estimate=cost,
    )(x, w, b.reshape(1, Nout))


# ----------------------------------------------------------------------------
# NoRGa attention core: flash-style kv blocking, all heads per grid step
# ----------------------------------------------------------------------------
def _attn_kernel(act_ref, q_ref, k_ref, v_ref, kp_ref, vp_ref, o_ref,
                 m_sc, l_sc, acc_sc, *, exp_dtype):
    kv_i = pl.program_id(2)
    n_kv = pl.num_programs(2)

    # contract hd, batch over heads:  (n, H, hd) x (m, H, hd) -> (H, n, m)
    qk_dims = (((2,), (2,)), ((1,), (1,)))
    # contract kv length, batch over heads:  (H, n, m) x (m, H, hd) -> (H, n, hd)
    pv_dims = (((2,), (0,)), ((0,), (1,)))

    def online_update(logits, vals):
        # logits: (H, tq, m) f32; vals: (m, H, hd) in the input (bf16) dtype.
        m_prev = m_sc[...]
        m_new = jnp.maximum(m_prev, logits.max(axis=-1, keepdims=True))
        alpha = jnp.exp(m_prev - m_new)
        # exponent in bf16 on chips with a bf16 EUP (v6e/v7x); f32 otherwise.
        p = jnp.exp((logits - m_new).astype(exp_dtype))
        # denominator accumulation always in f32 (long-row precision).
        l_sc[...] = alpha * l_sc[...] + jnp.sum(
            p.astype(jnp.float32), axis=-1, keepdims=True)
        acc_sc[...] = alpha * acc_sc[...] + lax.dot_general(
            p.astype(vals.dtype), vals, pv_dims,
            preferred_element_type=jnp.float32)
        m_sc[...] = m_new

    # ---- init + prompt prefix with NoRGa tanh gating (first kv step only) ----
    @pl.when(kv_i == 0)
    def _():
        m_sc[...] = jnp.full(m_sc.shape, -jnp.inf, m_sc.dtype)
        l_sc[...] = jnp.zeros(l_sc.shape, l_sc.dtype)
        acc_sc[...] = jnp.zeros(acc_sc.shape, acc_sc.dtype)

        # `scale` is already folded into the q columns of the qkv projection,
        # so q needs no per-step rescaling anywhere in this kernel.
        s0 = act_ref[0]
        s1 = act_ref[1]
        pa = lax.dot_general(q_ref[...], kp_ref[...], qk_dims,
                             preferred_element_type=jnp.float32)   # (H, tq, P)
        pa = pa + jnp.tanh(pa * s0) * s1
        online_update(pa, vp_ref[...])

    # ---- self-attention kv tile (online softmax update, every step) ----
    a = lax.dot_general(q_ref[...], k_ref[...], qk_dims,
                        preferred_element_type=jnp.float32)        # (H, tq, tk)
    online_update(a, v_ref[...])

    # ---- finalize: normalize exactly, one permutation + one dense store ----
    @pl.when(kv_i == n_kv - 1)
    def _():
        inv = pl.reciprocal(l_sc[...], approx=False)                # exact
        out = acc_sc[...] * inv                                     # (H, tq, hd)
        # Single XLU permutation + one dense store instead of H sublane-strided
        # lane-masked per-head stores (worst on v5e's single vst slot).
        o_ref[...] = pltpu.einshape("hqd->qhd", out).astype(o_ref.dtype)


def attention_pallas(qkv, prompt, act_scale, *, tq_target=None, tk_target=None):
    """qkv: (B, N, 3, H, hd); prompt: (B, 2, P, H, hd); act_scale: (2,)
    -> (B, N, H, hd) (contiguously reshapeable to (B, N, C), no transpose)."""
    cfg = _tpu_config()
    if tq_target is None:
        tq_target = cfg["tq_target"]
    if tk_target is None:
        tk_target = cfg["tk_target"]

    B, N, _, H, hd = qkv.shape
    P = prompt.shape[2]
    tq = _pick_div(N, tq_target)
    tk = _pick_div(N, tk_target)
    exp_dtype = jnp.bfloat16 if cfg["bf16_eup"] else jnp.float32
    kernel = functools.partial(_attn_kernel, exp_dtype=exp_dtype)

    dsize = jnp.dtype(qkv.dtype).itemsize
    cost = pl.CostEstimate(
        flops=4 * B * H * N * (N + P) * hd,
        transcendentals=B * H * N * (N + 2 * P),
        bytes_accessed=(3 * B * N * H * hd * (N // tq)  # k/v re-streamed per q-tile
                        + 2 * B * P * H * hd
                        + B * N * H * hd) * dsize)

    # TODO(synk): conditional optimizations from the review left unapplied
    # pending bundle/trace evidence: pl.Buffered(3) on k/v for v5e exposed DMA,
    # MXU-based row-sum (contract p against [v|ones]) if the XLU saturates, and
    # head-major q/k/v staging if Mosaic inserts per-step relayouts for the
    # batched dot_generals.
    return pl.pallas_call(
        kernel,
        out_shape=jax.ShapeDtypeStruct((B, N, H, hd), qkv.dtype),
        grid_spec=pltpu.PrefetchScalarGridSpec(
            num_scalar_prefetch=1,
            grid=(B, N // tq, N // tk),
            in_specs=[
                # q / k / v read straight from the (B, N, 3, H, hd) qkv slab
                pl.BlockSpec((None, tq, None, H, hd),
                             lambda b, qi, ki, act: (b, qi, 0, 0, 0)),
                pl.BlockSpec((None, tk, None, H, hd),
                             lambda b, qi, ki, act: (b, ki, 1, 0, 0)),
                pl.BlockSpec((None, tk, None, H, hd),
                             lambda b, qi, ki, act: (b, ki, 2, 0, 0)),
                # key / value prefixes straight from the (B, 2, P, H, hd) prompt
                pl.BlockSpec((None, None, P, H, hd),
                             lambda b, qi, ki, act: (b, 0, 0, 0, 0)),
                pl.BlockSpec((None, None, P, H, hd),
                             lambda b, qi, ki, act: (b, 1, 0, 0, 0)),
            ],
            out_specs=pl.BlockSpec((None, tq, H, hd),
                                   lambda b, qi, ki, act: (b, qi, 0, 0)),
            scratch_shapes=[
                pltpu.VMEM((H, tq, 1), jnp.float32),    # running row max
                pltpu.VMEM((H, tq, 1), jnp.float32),    # running denominator
                pltpu.VMEM((H, tq, hd), jnp.float32),   # output accumulator
            ],
        ),
        compiler_params=pltpu.CompilerParams(
            dimension_semantics=("parallel", "parallel", "arbitrary"),
            vmem_limit_bytes=cfg["vmem_limit"]),
        cost_estimate=cost,
    )(act_scale, qkv, qkv, qkv, prompt, prompt)


# ----------------------------------------------------------------------------
# Module wrapper (parameters + forward)
# ----------------------------------------------------------------------------
def init_params(key, dim, qkv_bias=False):
    k1, k2 = jax.random.split(key)
    return {
        # stored transposed vs. PyTorch: (in, out)
        "w_qkv": jax.random.normal(k1, (dim, 3 * dim), jnp.float32) * 0.02,
        "b_qkv": jnp.zeros((3 * dim,), jnp.float32),  # qkv_bias=False -> zeros
        "w_proj": jax.random.normal(k2, (dim, dim), jnp.float32) * 0.02,
        "b_proj": jnp.linspace(-0.1, 0.1, dim).astype(jnp.float32),
    }


def norga_attention_forward(params, x, prompt, act_scale, num_heads,
                            compute_dtype=jnp.bfloat16):
    B, N, C = x.shape
    H = num_heads
    hd = C // H
    scale = float(hd) ** -0.5
    out_dtype = x.dtype

    # Fold the attention `scale` into the q columns of the qkv projection so
    # the attention kernel never rescales q (or the logits) inside the kv loop.
    col_scale = jnp.concatenate(
        [jnp.full((C,), scale, jnp.float32), jnp.ones((2 * C,), jnp.float32)])
    w_qkv = (params["w_qkv"] * col_scale[None, :]).astype(compute_dtype)
    b_qkv = (params["b_qkv"] * col_scale).astype(jnp.float32)
    w_proj = params["w_proj"].astype(compute_dtype)
    b_proj = params["b_proj"].astype(jnp.float32)

    # qkv linear (tiled Pallas matmul, bf16 MXU datapath, f32 accumulation).
    # The reshape to (B, N, 3, H, hd) is a free view; per-head / q-k-v slicing
    # happens inside the attention BlockSpec index maps (no HBM transposes).
    qkv = linear_pallas(x.reshape(B * N, C).astype(compute_dtype),
                        w_qkv, b_qkv, out_dtype=compute_dtype)
    qkv = qkv.reshape(B, N, 3, H, hd)

    # fused attention core -> (B, N, H, hd)
    out = attention_pallas(qkv, prompt.astype(compute_dtype),
                           act_scale.astype(jnp.float32))

    # (B, N, H, hd) reshapes contiguously to (B*N, C); proj linear (Pallas).
    out = linear_pallas(out.reshape(B * N, C), w_proj, b_proj,
                        out_dtype=out_dtype)
    # TODO(synk): attn_drop / proj_drop are Dropout(p=0.0) -> identity; not implemented.
    return out.reshape(B, N, C)


# ----------------------------------------------------------------------------
# Pure-JAX reference (mirrors the PyTorch forward, f32) for validation
# ----------------------------------------------------------------------------
def norga_attention_reference(params, x, prompt, act_scale, num_heads):
    B, N, C = x.shape
    H = num_heads
    hd = C // H
    scale = float(hd) ** -0.5

    qkv = x.reshape(B * N, C) @ params["w_qkv"] + params["b_qkv"]
    qkv = qkv.reshape(B, N, 3, H, hd).transpose(2, 0, 3, 1, 4)
    q, k, v = qkv[0], qkv[1], qkv[2]

    pr = jnp.transpose(prompt, (1, 0, 3, 2, 4))
    kp, vp = pr[0], pr[1]
    v_full = jnp.concatenate([vp, v], axis=2)

    prompt_attn = jnp.einsum("bhnd,bhpd->bhnp", q, kp) * scale
    prompt_attn = prompt_attn + jnp.tanh(prompt_attn * act_scale[0]) * act_scale[1]
    attn = jnp.einsum("bhnd,bhmd->bhnm", q, k) * scale
    attn = jnp.concatenate([prompt_attn, attn], axis=-1)
    attn = jax.nn.softmax(attn, axis=-1)

    out = jnp.einsum("bhnm,bhmd->bhnd", attn, v_full)
    out = out.transpose(0, 2, 1, 3).reshape(B * N, C)
    out = out @ params["w_proj"] + params["b_proj"]
    return out.reshape(B, N, C)


# ----------------------------------------------------------------------------
if __name__ == "__main__":
    B, N, C = 2, 8, 32
    H = 4
    hd = C // H
    P = 4  # prompt prefix length

    key = jax.random.PRNGKey(0)
    kx, kp_, kparam = jax.random.split(key, 3)

    x = jax.random.normal(kx, (B, N, C), jnp.float32)
    prompt = jax.random.normal(kp_, (B, 2, P, H, hd), jnp.float32)
    act_scale = jnp.array([1.5, 0.5], jnp.float32)

    params = init_params(kparam, C, qkv_bias=False)

    out = norga_attention_forward(params, x, prompt, act_scale, num_heads=H)
    out = jax.block_until_ready(out)

    ref = norga_attention_reference(params, x, prompt, act_scale, num_heads=H)
    assert out.shape == (B, N, C)
    # tolerance accounts for the bf16 MXU/EUP datapath (f32 accumulation).
    err = jnp.max(jnp.abs(out - ref))
    assert jnp.allclose(out, ref, atol=2e-2, rtol=2e-2), f"max abs diff {err}"

    print("KERNEL_OK")
</pallas_src>

<mosaic_0001>
module attributes {stable_mosaic.version = 11 : i64} {
  func.func @_linear_kernel(%arg0: i32, %arg1: i32, %arg2: i32, %arg3: memref<16x32xbf16, #tpu.memory_space<vmem>>, %arg4: memref<32x96xbf16, #tpu.memory_space<vmem>>, %arg5: memref<1x96xf32, #tpu.memory_space<vmem>>, %arg6: memref<16x96xbf16, #tpu.memory_space<vmem>>, %arg7: memref<16x96xf32, #tpu.memory_space<vmem>>) attributes {dimension_semantics = [#tpu.dimension_semantics<parallel>, #tpu.dimension_semantics<parallel>, #tpu.dimension_semantics<arbitrary>], iteration_bounds = array<i64: 1, 1, 1>, scalar_prefetch = 0 : i64, scratch_operands = 1 : i64, tpu.core_type = #tpu.core_type<tc>, window_params = [{transform_indices = @transform_0, window_bounds = array<i64: 16, 32>}, {transform_indices = @transform_1, window_bounds = array<i64: 32, 96>}, {transform_indices = @transform_2, window_bounds = array<i64: 1, 96>}, {transform_indices = @transform_3, window_bounds = array<i64: 16, 96>}]} {
    %c0_i32 = arith.constant 0 : i32
    %0 = arith.cmpi eq, %arg2, %c0_i32 : i32
    %1 = arith.extui %0 : i1 to i32
    %c0_i32_0 = arith.constant 0 : i32
    %2 = arith.cmpi ne, %1, %c0_i32_0 : i32
    scf.if %2 {
      %cst_10 = arith.constant 0.000000e+00 : f32
      %12 = vector.broadcast %cst_10 : f32 to vector<16x96xf32>
      %c0_11 = arith.constant 0 : index
      %c0_12 = arith.constant 0 : index
      %13 = vector.load %arg7[%c0_11, %c0_12] : memref<16x96xf32, #tpu.memory_space<vmem>>, vector<16x96xf32>
      tpu.vector_store %arg7[%c0_11, %c0_12], %12 {strides = array<i32>} : memref<16x96xf32, #tpu.memory_space<vmem>>, vector<16x96xf32>,
    } else {
    }
    %c0 = arith.constant 0 : index
    %c0_1 = arith.constant 0 : index
    %3 = vector.load %arg7[%c0, %c0_1] : memref<16x96xf32, #tpu.memory_space<vmem>>, vector<16x96xf32>
    %c0_2 = arith.constant 0 : index
    %c0_3 = arith.constant 0 : index
    %4 = vector.load %arg3[%c0_2, %c0_3] : memref<16x32xbf16, #tpu.memory_space<vmem>>, vector<16x32xbf16>
    %c0_4 = arith.constant 0 : index
    %c0_5 = arith.constant 0 : index
    %5 = vector.load %arg4[%c0_4, %c0_5] : memref<32x96xbf16, #tpu.memory_space<vmem>>, vector<32x96xbf16>
    %cst = arith.constant dense<0.000000e+00> : vector<16x96xf32>
    %6 = tpu.matmul %4, %5, %cst {dimension_numbers = #tpu.dot_dimension_numbers<[1], [0], [0], [1], [0, 0, 1, 1], [], []>} : vector<16x32xbf16>, vector<32x96xbf16>, vector<16x96xf32> -> vector<16x96xf32>
    %7 = arith.addf %3, %6 : vector<16x96xf32>
    %c0_6 = arith.constant 0 : index
    %c0_7 = arith.constant 0 : index
    %8 = vector.load %arg7[%c0_6, %c0_7] : memref<16x96xf32, #tpu.memory_space<vmem>>, vector<16x96xf32>
    tpu.vector_store %arg7[%c0_6, %c0_7], %7 {strides = array<i32>} : memref<16x96xf32, #tpu.memory_space<vmem>>, vector<16x96xf32>,
    %c0_i32_8 = arith.constant 0 : i32
    %9 = arith.cmpi eq, %arg2, %c0_i32_8 : i32
    %10 = arith.extui %9 : i1 to i32
    %c0_i32_9 = arith.constant 0 : i32
    %11 = arith.cmpi ne, %10, %c0_i32_9 : i32
    scf.if %11 {
      %c0_10 = arith.constant 0 : index
      %c0_11 = arith.constant 0 : index
      %12 = vector.load %arg7[%c0_10, %c0_11] : memref<16x96xf32, #tpu.memory_space<vmem>>, vector<16x96xf32>
      %c0_12 = arith.constant 0 : index
      %c0_13 = arith.constant 0 : index
      %13 = vector.load %arg5[%c0_12, %c0_13] : memref<1x96xf32, #tpu.memory_space<vmem>>, vector<1x96xf32>
      %14 = vector.broadcast %13 : vector<1x96xf32> to vector<16x96xf32>
      %15 = arith.addf %12, %14 : vector<16x96xf32>
      %16 = arith.truncf %15 : vector<16x96xf32> to vector<16x96xbf16>
      %c0_14 = arith.constant 0 : index
      %c0_15 = arith.constant 0 : index
      %17 = vector.load %arg6[%c0_14, %c0_15] : memref<16x96xbf16, #tpu.memory_space<vmem>>, vector<16x96xbf16>
      tpu.vector_store %arg6[%c0_14, %c0_15], %16 {strides = array<i32>} : memref<16x96xbf16, #tpu.memory_space<vmem>>, vector<16x96xbf16>,
    } else {
    }
    return
  }
  func.func @transform_0(%arg0: i32, %arg1: i32, %arg2: i32) -> (i32, i32) {
    %c0_i32 = arith.constant 0 : i32
    return %arg0, %arg2 : i32, i32
  }
  func.func @transform_1(%arg0: i32, %arg1: i32, %arg2: i32) -> (i32, i32) {
    %c0_i32 = arith.constant 0 : i32
    return %arg2, %arg1 : i32, i32
  }
  func.func @transform_2(%arg0: i32, %arg1: i32, %arg2: i32) -> (i32, i32) {
    %c0_i32 = arith.constant 0 : i32
    %c0_i32_0 = arith.constant 0 : i32
    return %c0_i32, %arg1 : i32, i32
  }
  func.func @transform_3(%arg0: i32, %arg1: i32, %arg2: i32) -> (i32, i32) {
    %c0_i32 = arith.constant 0 : i32
    return %arg0, %arg1 : i32, i32
  }
}

</mosaic_0001>

<llo_original>
// kernel: tpu_custom_call.1
$region0: #{tpu_custom_call.1}
  #allocation0 [shape = 'u32[]', space=smem, size = 0x4, offset = 0x4, fixed_abs, tag = 'smem constant byte address 0x4 - core index']
  #allocation1 [shape = 'u32[144,128]{1,0:T(1,128)}', space=vmem, size = 0x12000, scoped, tag = 'internal scratch']
  #allocation2 [shape = 'f32[16,96]{1,0:T(8,128)}', space=vmem, size = 0x2000, scoped, tag = 'scratch operand']
  %s0 = inlined_call_operand.hbm [shape: bf16[16,32], index: 0, kind: input, shape index: {}]
  %s1 = inlined_call_operand.hbm [shape: bf16[32,96], index: 1, kind: input, shape index: {}]
  %s2 = inlined_call_operand.hbm [shape: f32[1,96], index: 2, kind: input, shape index: {}]
  %s3 = inlined_call_operand.hbm [shape: bf16[16,96], index: 3, kind: output, shape index: {}]
  %s4 = sld [smem:[#allocation0]]
  $region42: #{tpu_custom_call.1} parent=0
    _
  %s6 = ssub.s32 1, %s4
  %s7 = scalar_select 0, %s6, %s4
  $region1: #{tpu_custom_call.1} parent=0
    #allocation3 [shape = 'u8[4096]{0}', space=vmem, size = 0x1000, scoped, tag = 'input window, operand 0, single buffered']
    #allocation4 [shape = 's32[1]{0}', space=sflag, size = 0x4, scoped, tag = 'scoped memory for tpu_custom_call.1']
    #allocation5 [shape = 's32[1]{0}', space=sflag, size = 0x4, scoped, tag = 'scoped memory for tpu_custom_call.1']
    #allocation6 [shape = 'u8[8192]{0}', space=vmem, size = 0x2000, scoped, tag = 'input window, operand 1, single buffered']
    #allocation7 [shape = 's32[1]{0}', space=sflag, size = 0x4, scoped, tag = 'scoped memory for tpu_custom_call.1']
    #allocation8 [shape = 'u8[512]{0}', space=vmem, size = 0x400, scoped, tag = 'input window, operand 2, single buffered']
    #allocation9 [shape = 'u8[4096]{0}', space=vmem, size = 0x1000, scoped, tag = 'output window, operand 0, single buffered']
    %8 = vsyncpa [#allocation4], 0
    %9 = vsyncpa [#allocation7], 0
    %10 = vsyncpa [#allocation5], 0
    // Predicated region
    $region2: #{tpu_custom_call.1} parent=1 // pred_check
      _
    $region3: #{tpu_custom_call.1} parent=1 // pred_check_branch
      %12 = sbr.rel (0) target = $region5
    $region4: #{tpu_custom_call.1} parent=1 // pred_region
      %s14 = ssub.s32 128, 128
      %15 = vsyncadd [#allocation4], %s14
      %s16 = sshll.u32 [#allocation3], 4
      %s17 = int_to_ptr.vmem [resolvable:$true] %s16
      %22 = dma.hbm_to_vmem [thread:$0]  %s0, 128, %s17, [#allocation4], 64, 64, 4
    $region5: #{tpu_custom_call.1} parent=1 // pred_fallthru
      _
    // Predicated region
    $region6: #{tpu_custom_call.1} parent=1 // pred_check
      _
    $region7: #{tpu_custom_call.1} parent=1 // pred_check_branch
      %24 = sbr.rel (0) target = $region9
    $region8: #{tpu_custom_call.1} parent=1 // pred_region
      %s26 = ssub.s32 256, 256
      %27 = vsyncadd [#allocation7], %s26
      %s28 = sshll.u32 [#allocation6], 4
      %s29 = int_to_ptr.vmem [resolvable:$true] %s28
      %34 = dma.hbm_to_vmem [thread:$0]  %s1, 256, %s29, [#allocation7], 64, 64, 4
    $region9: #{tpu_custom_call.1} parent=1 // pred_fallthru
      _
    // Predicated region
    $region10: #{tpu_custom_call.1} parent=1 // pred_check
      _
    $region11: #{tpu_custom_call.1} parent=1 // pred_check_branch
      %36 = sbr.rel (0) target = $region13
    $region12: #{tpu_custom_call.1} parent=1 // pred_region
      %s38 = ssub.s32 16, 16
      %39 = vsyncadd [#allocation7], %s38
      %s41 = sshll.u32 [#allocation8], 4
      %s42 = int_to_ptr.vmem [resolvable:$true] %s41
      %44 = dma.hbm_to_vmem [thread:$0]  %s2, 16, %s42, [#allocation7]
    $region13: #{tpu_custom_call.1} parent=1 // pred_fallthru
      _
    // Predicated region
    $region14: #{tpu_custom_call.1} parent=1 // pred_check
      _
    $region15: #{tpu_custom_call.1} parent=1 // pred_check_branch
      %46 = sbr.rel (0) target = $region17
    $region16: #{tpu_custom_call.1} parent=1 // pred_region
      %47 = dma.done [#allocation4], 128
    $region17: #{tpu_custom_call.1} parent=1 // pred_fallthru
      _
    // Predicated region
    $region18: #{tpu_custom_call.1} parent=1 // pred_check
      _
    $region19: #{tpu_custom_call.1} parent=1 // pred_check_branch
      %49 = sbr.rel (0) target = $region21
    $region20: #{tpu_custom_call.1} parent=1 // pred_region
      %50 = dma.done [#allocation7], 256
    $region21: #{tpu_custom_call.1} parent=1 // pred_fallthru
      _
    // Predicated region
    $region22: #{tpu_custom_call.1} parent=1 // pred_check
      _
    $region23: #{tpu_custom_call.1} parent=1 // pred_check_branch
      %52 = sbr.rel (0) target = $region25
    $region24: #{tpu_custom_call.1} parent=1 // pred_region
      %53 = dma.done [#allocation7], 16
    $region25: #{tpu_custom_call.1} parent=1 // pred_fallthru
      _
    %p55 = scmp.eq.s32.totalorder 0, 0
    // Predicated region
    $region26: #{tpu_custom_call.1} parent=1 // pred_check
      %p56 = pneg %p55
    $region27: #{tpu_custom_call.1} parent=1 // pred_check_branch
      %58 = sbr.rel (%p56) target = $region29
    $region28: #{tpu_custom_call.1} parent=1 // pred_region
      %vm59 = vcmask 785408
      %60 = vst.msk [vmem:[#allocation2] sm:$0xff] %vm59, 0.0
      %61 = vst.msk [vmem:[#allocation2 + $0x8] sm:$0xff] %vm59, 0.0
    $region29: #{tpu_custom_call.1} parent=1 // pred_fallthru
      _
    %v62 = vld [vmem:[#allocation2] sm:$0xff]
    %v63 = vld [vmem:[#allocation2 + $0x8] sm:$0xff]
    %v64 = vld [vmem:[#allocation3] sm:$0xf]
    %v65 = vld [vmem:[#allocation3 + $0x4] sm:$0xf]
    %v66 = vld [vmem:[#allocation6] sm:$0xf]
    %v67 = vld [vmem:[#allocation6 + $0x4] sm:$0xf]
    %v68 = vld [vmem:[#allocation6 + $0x8] sm:$0xf]
    %v69 = vld [vmem:[#allocation6 + $0xc] sm:$0xf]
    %v72 = vunpack.c.l.b16 %v64
    %v73 = vunpack.c.l.b16 %v65
    %v74 = vpack.c.b16 %v73, %v72
    %v79 = vunpack.c.l.b16 %v66
    %v80 = vunpack.c.l.b16 %v67
    %v81 = vunpack.c.l.b16 %v68
    %v82 = vunpack.c.l.b16 %v69
    %v83 = vpack.c.b16 %v80, %v79
    %v84 = vpack.c.b16 %v82, %v81
    %vm87 = vcmask 261120
    %v89 = vsel %vm87, %v74, 0
    %91 = vmatprep.subr.bf16.mxu0 0
    %92 = vmatpush1.bf16.msra.mxu0 %v83
    %93 = vmatprep.subr.bf16.mxu0 0
    %94 = vmatpush1.bf16.msra.mxu0 %v84
    %95 = vmatprep.subr.bf16.mxu0 0
    %96 = vmatpush1.bf16.msra.mxu0 0
    %97 = vmatprep.subr.bf16.mxu0 0
    %98 = vmatpush1.bf16.msra.mxu0 0
    %99 = vmatprep.subr.bf16.mxu0 0
    %100 = vmatpush1.bf16.msra.mxu0 0
    %101 = vmatprep.subr.bf16.mxu0 0
    %102 = vmatpush1.bf16.msra.mxu0 0
    %103 = vmatprep.subr.bf16.mxu0 0
    %104 = vmatpush1.bf16.msra.mxu0 0
    %105 = vmatprep.subr.bf16.mxu0 0
    %106 = vmatpush1.bf16.msra.mxu0 0
    %107 = vmatprep.subr.bf16.mxu0 0
    %108 = vmatpush1.bf16.msra.mxu0 0
    %109 = vmatprep.subr.bf16.mxu0 0
    %110 = vmatpush1.bf16.msra.mxu0 0
    %111 = vmatprep.subr.bf16.mxu0 0
    %112 = vmatpush1.bf16.msra.mxu0 0
    %113 = vmatprep.subr.bf16.mxu0 0
    %114 = vmatpush1.bf16.msra.mxu0 0
    %115 = vmatprep.subr.bf16.mxu0 0
    %116 = vmatpush1.bf16.msra.mxu0 0
    %117 = vmatprep.subr.bf16.mxu0 0
    %118 = vmatpush1.bf16.msra.mxu0 0
    %119 = vmatprep.subr.bf16.mxu0 0
    %120 = vmatpush1.bf16.msra.mxu0 0
    %121 = vmatprep.subr.bf16.mxu0 0
    %122 = vmatpush1.bf16.msra.mxu0 0
    %123 = vmatprep.mubr.bf16.mxu0 0
    %124 = vmatmul.mubr.bf16.gmra.mrb[0].mxu0 %v89
    %v125 = vpop.f32.mrb[0].mxu0
    %v126 = vadd.f32 0.0, %v125
    %v127 = vpop.f32.mrb[0].mxu0
    %v128 = vpop.f32.mrb[0].mxu0
    %v129 = vadd.f32 0.0, %v128
    %v130 = vpop.f32.mrb[0].mxu0
    %131 = vdwg.mxu0
    %v132 = vadd.f32 %v62, %v126
    %v133 = vadd.f32 %v63, %v129
    %vm134 = vcmask 785408
    %135 = vst.msk [vmem:[#allocation2] sm:$0xff] %vm134, %v132
    %136 = vst.msk [vmem:[#allocation2 + $0x8] sm:$0xff] %vm134, %v133
    // Predicated region
    $region30: #{tpu_custom_call.1} parent=1 // pred_check
      %p137 = pneg %p55
    $region31: #{tpu_custom_call.1} parent=1 // pred_check_branch
      %139 = sbr.rel (%p137) target = $region33
    $region32: #{tpu_custom_call.1} parent=1 // pred_region
      %v140 = vld [vmem:[#allocation2] sm:$0xff]
      %v141 = vld [vmem:[#allocation2 + $0x8] sm:$0xff]
      %v142 = vld [vmem:[#allocation8] sm:$0x1]
      %v144 = vlaneseq
      %v145 = vshrl.u32 %v144, 7
      %v146 = vsub.s32 0, %v145
      %v147 = vrot.slane %v142, %v146
      %v149 = vadd.f32 %v140, %v147
      %v150 = vadd.f32 %v141, %v147
      %v151 = vpack.c.bf16 %v150, %v149
      %v153 = vunpack.c.l.b16 %v151
      %v154 = vunpack.c.h.b16 %v151
      %v155 = vpack.c.b16 %v153, %v153
      %v156 = vpack.c.b16 %v154, %v154
      %vm159 = vcmask 781312
      %160 = vst.msk [vmem:[#allocation9] sm:$0xf] %vm159, %v155
      %161 = vst.msk [vmem:[#allocation9 + $0x4] sm:$0xf] %vm159, %v156
    $region33: #{tpu_custom_call.1} parent=1 // pred_fallthru
      _
    // Predicated region
    $region34: #{tpu_custom_call.1} parent=1 // pred_check
      _
    $region35: #{tpu_custom_call.1} parent=1 // pred_check_branch
      %163 = sbr.rel (0) target = $region37
    $region36: #{tpu_custom_call.1} parent=1 // pred_region
      %s165 = ssub.s32 128, 128
      %166 = vsyncadd [#allocation5], %s165
      %s167 = sshll.u32 [#allocation9], 4
      %s168 = int_to_ptr.vmem [resolvable:$true] %s167
      %173 = dma.vmem_to_hbm [thread:$0]  %s168, 128, %s3, [#allocation5], 64, 64, 4
    $region37: #{tpu_custom_call.1} parent=1 // pred_fallthru
      _
    // Predicated region
    $region38: #{tpu_custom_call.1} parent=1 // pred_check
      _
    $region39: #{tpu_custom_call.1} parent=1 // pred_check_branch
      %175 = sbr.rel (0) target = $region41
    $region40: #{tpu_custom_call.1} parent=1 // pred_region
      %176 = dma.done [#allocation5], 128
    $region41: #{tpu_custom_call.1} parent=1 // pred_fallthru
      _
    %177 = vsyncpa [#allocation4], 1
    %178 = vsyncpa [#allocation7], 1
    %179 = vsyncpa [#allocation5], 1

</llo_original>
